<compile_context>
chip_gen: v7x
topology: tpu7x:2x2x1
jax: 0.10.0
libtpu: 0.0.40
codegen_flags: <defaults>
</compile_context>

<pallas_src>
import functools
import math

import jax
import jax.numpy as jnp
from jax.experimental import pallas as pl
from jax.experimental.pallas import tpu as pltpu


def _round_up(v, m):
    return ((v + m - 1) // m) * m


@functools.lru_cache(maxsize=1)
def _vmem_capacity_bytes():
    try:
        cap = getattr(pltpu.get_tpu_info(), "vmem_capacity_bytes", None)
        if cap:
            return int(cap)
    except Exception:
        pass
    return 64 * 1024 * 1024  # conservative default (v7x per-TensorCore VMEM)


# --------------------------------------------------------------------------
# Kernel 1: primary path — whole (padded) graphs per grid step, fused GEMM.
# --------------------------------------------------------------------------
def _gconv_fused_kernel(a_ref, x_ref, w_ref, b_ref, o_ref):
    Bt, Np, _ = a_ref.shape
    D_in = x_ref.shape[-1]
    Dp2 = w_ref.shape[-1]          # 2 * Dp (fused [Wa|Wu], lane-dense)
    Dp = Dp2 // 2

    A = a_ref[...]                 # native dtype; MXU consumes it directly
    x = x_ref[...]

    # Fused [Wa|Wu] GEMM, flattened over (Bt*Np) to fill the MXU M dimension.
    xw = jnp.dot(x.reshape(Bt * Np, D_in), w_ref[...],
                 preferred_element_type=jnp.float32) + b_ref[...]
    xw = jnp.maximum(xw, 0.0).reshape(Bt, Np, Dp2)
    ax = xw[:, :, :Dp]             # relu(x @ Wa + ba)
    ux = xw[:, :, Dp:]             # relu(x @ Wu + bu)

    # F.normalize(A, p=1, dim=-2) folded onto the small operand:
    #   (A / col_l1) @ relu(ax) == A @ (relu(ax) * (1/col_l1)[:, None])
    col_l1 = jnp.sum(jnp.abs(A), axis=-2, dtype=jnp.float32)   # (Bt, Np)
    inv = 1.0 / jnp.maximum(col_l1, 1e-12)
    p = ax * inv[:, :, None]

    out = jnp.einsum("bij,bjd->bid", A, p,
                     preferred_element_type=jnp.float32) + ux
    o_ref[...] = out.astype(o_ref.dtype)


# --------------------------------------------------------------------------
# Kernel 2: fallback path — K-tiled over A's column dim, f32 accumulator.
# --------------------------------------------------------------------------
def _gconv_ktiled_kernel(a_ref, xk_ref, xf_ref, wa_ref, ba_ref, wu_ref, bu_ref,
                         o_ref, acc_ref):
    k = pl.program_id(1)
    nk = pl.num_programs(1)
    Bt, Np, Kt = a_ref.shape
    D_in = xk_ref.shape[-1]
    Dp = wa_ref.shape[-1]

    @pl.when(k == 0)
    def _():
        # Initialize the accumulator with the relu(x @ Wu + bu) skip term.
        ux = jnp.dot(xf_ref[...].reshape(Bt * Np, D_in), wu_ref[...],
                     preferred_element_type=jnp.float32) + bu_ref[...]
        acc_ref[...] = jnp.maximum(ux, 0.0).reshape(Bt, Np, Dp)

    A_k = a_ref[...]                                         # (Bt, Np, Kt)
    ax = jnp.dot(xk_ref[...].reshape(Bt * Kt, D_in), wa_ref[...],
                 preferred_element_type=jnp.float32) + ba_ref[...]
    ax = jnp.maximum(ax, 0.0).reshape(Bt, Kt, Dp)
    # Full column of A is present in this block, so col-L1 is exact per tile.
    col_l1 = jnp.sum(jnp.abs(A_k), axis=-2, dtype=jnp.float32)   # (Bt, Kt)
    inv = 1.0 / jnp.maximum(col_l1, 1e-12)
    p = ax * inv[:, :, None]

    acc_ref[...] += jnp.einsum("bik,bkd->bid", A_k, p,
                               preferred_element_type=jnp.float32)

    @pl.when(k == nk - 1)
    def _():
        o_ref[...] = acc_ref[...].astype(o_ref.dtype)


# --------------------------------------------------------------------------
# Wrapper: padding, tiling decisions, pallas_call dispatch.
# --------------------------------------------------------------------------
def gconv_pallas(A, x, w_cat, b_cat, wa_p, ba_p, wu_p, bu_p, d_out,
                 *, force_k_tile=None):
    """Gconv forward. Returns (B, N, d_out)."""
    B, N, _ = A.shape
    D_in = x.shape[-1]
    Dp2 = w_cat.shape[-1]
    Dp = Dp2 // 2

    a_bytes = A.dtype.itemsize
    x_bytes = x.dtype.itemsize
    o_bytes = x.dtype.itemsize

    # Generation-aware VMEM budget for the whole live set (double-buffered I/O
    # blocks + in-kernel f32 temporaries + weights).
    vmem_cap = _vmem_capacity_bytes()
    budget = int(vmem_cap * 0.70)

    # Pad N to a sublane multiple so in-kernel reshapes stay tile-aligned.
    Np = _round_up(max(N, 8), 8)

    # Fused weights + bias (double-buffered by the pipeline).
    # Note: their index_maps are constant; pl.Buffered(1) on those BlockSpecs
    # would halve this when D_in * Dp2 is large.
    w_fused_bytes = 2 * (D_in * Dp2 + Dp2) * w_cat.dtype.itemsize

    def fused_live_bytes(bt):
        io = bt * (Np * Np * a_bytes + Np * D_in * x_bytes + Np * Dp * o_bytes)
        tmp = bt * Np * (2 * Dp + Dp + Dp) * 4       # xw + p + f32 out
        return 2 * io + tmp + w_fused_bytes

    use_k_tiling = (force_k_tile is not None) or (fused_live_bytes(1) > budget)

    if not use_k_tiling:
        # ---- primary path: batch-tiled grid with >= 2 steps ----
        min_steps = 1 if B == 1 else 2
        steps = min_steps
        while steps < B and fused_live_bytes(pl.cdiv(B, steps)) > budget:
            steps += 1
        Bt = pl.cdiv(B, steps)
        nsteps = pl.cdiv(B, Bt)          # >= 2 whenever B >= 2
        B_pad = nsteps * Bt

        pad_b, pad_n = B_pad - B, Np - N
        if pad_b or pad_n:
            A_p = jnp.pad(A, ((0, pad_b), (0, pad_n), (0, pad_n)))
            x_p = jnp.pad(x, ((0, pad_b), (0, pad_n), (0, 0)))
        else:
            A_p, x_p = A, x

        vmem_limit = int(min(vmem_cap,
                             max(fused_live_bytes(Bt) + (16 << 20), 32 << 20)))

        out = pl.pallas_call(
            _gconv_fused_kernel,
            out_shape=jax.ShapeDtypeStruct((B_pad, Np, Dp), x.dtype),
            grid_spec=pltpu.PrefetchScalarGridSpec(
                num_scalar_prefetch=0,
                grid=(nsteps,),
                in_specs=[
                    pl.BlockSpec((Bt, Np, Np), lambda b: (b, 0, 0)),     # A
                    pl.BlockSpec((Bt, Np, D_in), lambda b: (b, 0, 0)),   # x
                    pl.BlockSpec((D_in, Dp2), lambda b: (0, 0)),         # [Wa|Wu]
                    pl.BlockSpec((1, Dp2), lambda b: (0, 0)),            # [ba|bu]
                ],
                out_specs=pl.BlockSpec((Bt, Np, Dp), lambda b: (b, 0, 0)),
            ),
            compiler_params=pltpu.CompilerParams(
                dimension_semantics=("parallel",),
                vmem_limit_bytes=vmem_limit),
        )(A_p, x_p, w_cat, b_cat)
        return out[:B, :N, :d_out]

    # ---- fallback path: K-tile A's column (j) dim with an f32 accumulator ----
    w_split_bytes = 2 * 2 * (D_in * Dp + Dp) * wa_p.dtype.itemsize

    def k_live_bytes(kt, np_):
        io = (np_ * kt * a_bytes + kt * D_in * x_bytes
              + np_ * D_in * x_bytes + np_ * Dp * o_bytes)
        tmp = (np_ * Dp + 2 * kt * Dp + np_ * Dp) * 4   # acc + ax/p + f32 out
        return 2 * io + tmp + w_split_bytes

    if force_k_tile is not None:
        Kt = max(128, _round_up(int(force_k_tile), 128))
    else:
        Kt = 128
        while (Kt * 2 < _round_up(N, 128)
               and k_live_bytes(Kt * 2, _round_up(N, Kt * 2)) <= budget):
            Kt *= 2
    Np_k = _round_up(max(N, Kt), Kt)     # multiple of Kt (lane-dense A tiles)
    nk = Np_k // Kt

    pad_n = Np_k - N
    A_p = jnp.pad(A, ((0, 0), (0, pad_n), (0, pad_n))) if pad_n else A
    x_p = jnp.pad(x, ((0, 0), (0, pad_n), (0, 0))) if pad_n else x

    vmem_limit = int(min(vmem_cap,
                         max(k_live_bytes(Kt, Np_k) + (16 << 20), 32 << 20)))

    out = pl.pallas_call(
        _gconv_ktiled_kernel,
        out_shape=jax.ShapeDtypeStruct((B, Np_k, Dp), x.dtype),
        grid_spec=pltpu.PrefetchScalarGridSpec(
            num_scalar_prefetch=0,
            grid=(B, nk),
            in_specs=[
                pl.BlockSpec((1, Np_k, Kt), lambda b, k: (b, 0, k)),     # A cols
                pl.BlockSpec((1, Kt, D_in), lambda b, k: (b, k, 0)),     # x (ax)
                pl.BlockSpec((1, Np_k, D_in), lambda b, k: (b, 0, 0)),   # x (ux)
                pl.BlockSpec((D_in, Dp), lambda b, k: (0, 0)),           # Wa
                pl.BlockSpec((1, Dp), lambda b, k: (0, 0)),              # ba
                pl.BlockSpec((D_in, Dp), lambda b, k: (0, 0)),           # Wu
                pl.BlockSpec((1, Dp), lambda b, k: (0, 0)),              # bu
            ],
            out_specs=pl.BlockSpec((1, Np_k, Dp), lambda b, k: (b, 0, 0)),
            scratch_shapes=[pltpu.VMEM((1, Np_k, Dp), jnp.float32)],
        ),
        compiler_params=pltpu.CompilerParams(
            dimension_semantics=("parallel", "arbitrary"),
            vmem_limit_bytes=vmem_limit),
    )(A_p, x_p, x_p, wa_p, ba_p, wu_p, bu_p)
    return out[:B, :N, :d_out]


class SiameseGconvPallas:
    """Siamese_Gconv: one Gconv (shared weights) applied to one or more graphs."""

    def __init__(self, in_features, num_features, key):
        k1, k2, k3, k4 = jax.random.split(key, 4)
        bound = 1.0 / math.sqrt(in_features)
        # Stored pre-transposed: (in, out)  (x @ W == x @ W_torch.T)
        self.wa = jax.random.uniform(k1, (in_features, num_features),
                                     jnp.float32, -bound, bound)
        self.ba = jax.random.uniform(k2, (1, num_features),
                                     jnp.float32, -bound, bound)
        self.wu = jax.random.uniform(k3, (in_features, num_features),
                                     jnp.float32, -bound, bound)
        self.bu = jax.random.uniform(k4, (1, num_features),
                                     jnp.float32, -bound, bound)
        self.d_out = num_features

        # Lane-dense padded copies: Dp = roundup(num_features, 128).
        Dp = _round_up(num_features, 128)
        pad = Dp - num_features
        self.wa_p = jnp.pad(self.wa, ((0, 0), (0, pad)))
        self.wu_p = jnp.pad(self.wu, ((0, 0), (0, pad)))
        self.ba_p = jnp.pad(self.ba, ((0, 0), (0, pad)))
        self.bu_p = jnp.pad(self.bu, ((0, 0), (0, pad)))
        # Fused [Wa|Wu] / [ba|bu] for the single-GEMM primary path.
        self.w_cat = jnp.concatenate([self.wa_p, self.wu_p], axis=1)   # (D_in, 2*Dp)
        self.b_cat = jnp.concatenate([self.ba_p, self.bu_p], axis=1)   # (1, 2*Dp)

    def gconv(self, A, x, **kw):
        return gconv_pallas(A, x, self.w_cat, self.b_cat,
                            self.wa_p, self.ba_p, self.wu_p, self.bu_p,
                            self.d_out, **kw)

    def __call__(self, g1, *args):
        if len(args) == 0:
            return self.gconv(*g1)
        graphs = [g1] + list(args)
        A0, x0 = graphs[0]
        same = all(g[0].shape == A0.shape and g[1].shape == x0.shape and
                   g[0].dtype == A0.dtype and g[1].dtype == x0.dtype
                   for g in graphs)
        if same:
            # One fused launch: weights loaded once; larger batch axis means
            # more grid steps for v7x megacore sharding and DMA/compute overlap.
            A_cat = jnp.concatenate([g[0] for g in graphs], axis=0)
            x_cat = jnp.concatenate([g[1] for g in graphs], axis=0)
            out = self.gconv(A_cat, x_cat)
            Bper = A0.shape[0]
            return [out[i * Bper:(i + 1) * Bper] for i in range(len(graphs))]
        return [self.gconv(*g) for g in graphs]


def _gconv_ref(A, x, wa, ba, wu, bu):
    # Pure-JAX reference mirroring the PyTorch forward.
    col_l1 = jnp.sum(jnp.abs(A), axis=-2, keepdims=True)
    A_n = A / jnp.maximum(col_l1, 1e-12)
    ax = x @ wa + ba
    ux = x @ wu + bu
    return jnp.einsum("bij,bjd->bid", A_n, jnp.maximum(ax, 0.0)) + jnp.maximum(ux, 0.0)


if __name__ == "__main__":
    key = jax.random.PRNGKey(0)
    kA1, kx1, kA2, kx2, kA3, kx3, kparam = jax.random.split(key, 7)

    B, N, D_IN, D_OUT = 2, 8, 16, 32

    # Binary connectivity matrices {0, 1}, node features.
    A1 = (jax.random.uniform(kA1, (B, N, N)) > 0.5).astype(jnp.float32)
    x1 = jax.random.normal(kx1, (B, N, D_IN), jnp.float32)
    A2 = (jax.random.uniform(kA2, (B, N, N)) > 0.5).astype(jnp.float32)
    x2 = jax.random.normal(kx2, (B, N, D_IN), jnp.float32)

    model = SiameseGconvPallas(D_IN, D_OUT, kparam)

    # Siamese call: two graphs, shared weights (merged into one pallas_call,
    # grid of 2 parallel batch steps).
    emb1, emb2 = model((A1, x1), (A2, x2))
    emb1 = jax.block_until_ready(emb1)
    emb2 = jax.block_until_ready(emb2)

    ref1 = _gconv_ref(A1, x1, model.wa, model.ba, model.wu, model.bu)
    ref2 = _gconv_ref(A2, x2, model.wa, model.ba, model.wu, model.bu)
    assert emb1.shape == (B, N, D_OUT) and emb2.shape == (B, N, D_OUT)
    assert jnp.allclose(emb1, ref1, atol=1e-5, rtol=1e-5)
    assert jnp.allclose(emb2, ref2, atol=1e-5, rtol=1e-5)

    # Single-graph path.
    single = jax.block_until_ready(model((A1, x1)))
    assert jnp.allclose(single, ref1, atol=1e-5, rtol=1e-5)

    # Exercise the K-tiled fallback (forced small column tile) on a larger graph.
    N3 = 200
    A3 = (jax.random.uniform(kA3, (B, N3, N3)) > 0.5).astype(jnp.float32)
    x3 = jax.random.normal(kx3, (B, N3, D_IN), jnp.float32)
    out3 = jax.block_until_ready(model.gconv(A3, x3, force_k_tile=128))
    ref3 = _gconv_ref(A3, x3, model.wa, model.ba, model.wu, model.bu)
    assert out3.shape == (B, N3, D_OUT)
    assert jnp.allclose(out3, ref3, atol=1e-4, rtol=1e-4)

    print("KERNEL_OK")
</pallas_src>

<mosaic_0001>
module attributes {stable_mosaic.version = 11 : i64} {
  func.func @_gconv_fused_kernel(%arg0: i32, %arg1: memref<2x8x8xf32, #tpu.memory_space<vmem>>, %arg2: memref<2x8x16xf32, #tpu.memory_space<vmem>>, %arg3: memref<16x256xf32, #tpu.memory_space<vmem>>, %arg4: memref<1x256xf32, #tpu.memory_space<vmem>>, %arg5: memref<2x8x128xf32, #tpu.memory_space<vmem>>) attributes {dimension_semantics = [#tpu.dimension_semantics<parallel>], iteration_bounds = array<i64: 2>, scalar_prefetch = 0 : i64, scratch_operands = 0 : i64, tpu.core_type = #tpu.core_type<tc>, window_params = [{transform_indices = @transform_0, window_bounds = array<i64: 2, 8, 8>}, {transform_indices = @transform_1, window_bounds = array<i64: 2, 8, 16>}, {pipeline_mode = #tpu.pipeline_mode<synchronous>, transform_indices = @transform_2, window_bounds = array<i64: 16, 256>}, {pipeline_mode = #tpu.pipeline_mode<synchronous>, transform_indices = @transform_3, window_bounds = array<i64: 1, 256>}, {transform_indices = @transform_4, window_bounds = array<i64: 2, 8, 128>}]} {
    %c0 = arith.constant 0 : index
    %c0_0 = arith.constant 0 : index
    %c0_1 = arith.constant 0 : index
    %0 = vector.load %arg1[%c0, %c0_0, %c0_1] : memref<2x8x8xf32, #tpu.memory_space<vmem>>, vector<2x8x8xf32>
    %c0_2 = arith.constant 0 : index
    %c0_3 = arith.constant 0 : index
    %c0_4 = arith.constant 0 : index
    %1 = vector.load %arg2[%c0_2, %c0_3, %c0_4] : memref<2x8x16xf32, #tpu.memory_space<vmem>>, vector<2x8x16xf32>
    %2 = vector.shape_cast %1 : vector<2x8x16xf32> to vector<16x16xf32>
    %c0_5 = arith.constant 0 : index
    %c0_6 = arith.constant 0 : index
    %3 = vector.load %arg3[%c0_5, %c0_6] : memref<16x256xf32, #tpu.memory_space<vmem>>, vector<16x256xf32>
    %cst = arith.constant dense<0.000000e+00> : vector<16x256xf32>
    %4 = tpu.matmul %2, %3, %cst {dimension_numbers = #tpu.dot_dimension_numbers<[1], [0], [0], [1], [0, 0, 1, 1], [], []>} : vector<16x16xf32>, vector<16x256xf32>, vector<16x256xf32> -> vector<16x256xf32>
    %c0_7 = arith.constant 0 : index
    %c0_8 = arith.constant 0 : index
    %5 = vector.load %arg4[%c0_7, %c0_8] : memref<1x256xf32, #tpu.memory_space<vmem>>, vector<1x256xf32>
    %6 = vector.broadcast %5 : vector<1x256xf32> to vector<16x256xf32>
    %7 = arith.addf %4, %6 : vector<16x256xf32>
    %cst_9 = arith.constant 0.000000e+00 : f32
    %8 = vector.broadcast %cst_9 : f32 to vector<16x256xf32>
    %9 = arith.maximumf %7, %8 : vector<16x256xf32>
    %10 = vector.shape_cast %9 : vector<16x256xf32> to vector<2x8x256xf32>
    %11 = vector.extract_strided_slice %10 {offsets = [0, 0, 0], sizes = [2, 8, 128], strides = [1, 1, 1]} : vector<2x8x256xf32> to vector<2x8x128xf32>
    %12 = vector.extract_strided_slice %10 {offsets = [0, 0, 128], sizes = [2, 8, 128], strides = [1, 1, 1]} : vector<2x8x256xf32> to vector<2x8x128xf32>
    %13 = math.absf %0 : vector<2x8x8xf32>
    %cst_10 = arith.constant dense<0.000000e+00> : vector<2x8xf32>
    %14 = vector.multi_reduction <add>, %13, %cst_10 [1] : vector<2x8x8xf32> to vector<2x8xf32>
    %cst_11 = arith.constant 9.99999996E-13 : f32
    %15 = vector.broadcast %cst_11 : f32 to vector<2x8xf32>
    %16 = arith.maximumf %14, %15 : vector<2x8xf32>
    %cst_12 = arith.constant 1.000000e+00 : f32
    %17 = vector.broadcast %cst_12 : f32 to vector<2x8xf32>
    %18 = arith.divf %17, %16 : vector<2x8xf32>
    %19 = vector.shape_cast %18 : vector<2x8xf32> to vector<2x8x1xf32>
    %20 = vector.broadcast %19 : vector<2x8x1xf32> to vector<2x8x128xf32>
    %21 = arith.mulf %11, %20 : vector<2x8x128xf32>
    "tpu.trace_start"() <{level = 10 : i32, message = "bij,bjd->bid"}> : () -> ()
    %cst_13 = arith.constant dense<0.000000e+00> : vector<2x8x128xf32>
    %22 = tpu.matmul %0, %21, %cst_13 {dimension_numbers = #tpu.dot_dimension_numbers<[2], [1], [1], [2], [0, 0, 0, 1, 1, 2], [0], [0]>} : vector<2x8x8xf32>, vector<2x8x128xf32>, vector<2x8x128xf32> -> vector<2x8x128xf32>
    "tpu.trace_stop"() : () -> ()
    %23 = arith.addf %22, %12 : vector<2x8x128xf32>
    %c0_14 = arith.constant 0 : index
    %c0_15 = arith.constant 0 : index
    %c0_16 = arith.constant 0 : index
    %24 = vector.load %arg5[%c0_14, %c0_15, %c0_16] : memref<2x8x128xf32, #tpu.memory_space<vmem>>, vector<2x8x128xf32>
    tpu.vector_store %arg5[%c0_14, %c0_15, %c0_16], %23 {strides = array<i32>} : memref<2x8x128xf32, #tpu.memory_space<vmem>>, vector<2x8x128xf32>,
    return
  }
  func.func @transform_0(%arg0: i32) -> (i32, i32, i32) {
    %c0_i32 = arith.constant 0 : i32
    %c0_i32_0 = arith.constant 0 : i32
    %c0_i32_1 = arith.constant 0 : i32
    return %arg0, %c0_i32, %c0_i32_0 : i32, i32, i32
  }
  func.func @transform_1(%arg0: i32) -> (i32, i32, i32) {
    %c0_i32 = arith.constant 0 : i32
    %c0_i32_0 = arith.constant 0 : i32
    %c0_i32_1 = arith.constant 0 : i32
    return %arg0, %c0_i32, %c0_i32_0 : i32, i32, i32
  }
  func.func @transform_2(%arg0: i32) -> (i32, i32) {
    %c0_i32 = arith.constant 0 : i32
    %c0_i32_0 = arith.constant 0 : i32
    %c0_i32_1 = arith.constant 0 : i32
    return %c0_i32, %c0_i32_0 : i32, i32
  }
  func.func @transform_3(%arg0: i32) -> (i32, i32) {
    %c0_i32 = arith.constant 0 : i32
    %c0_i32_0 = arith.constant 0 : i32
    %c0_i32_1 = arith.constant 0 : i32
    return %c0_i32, %c0_i32_0 : i32, i32
  }
  func.func @transform_4(%arg0: i32) -> (i32, i32, i32) {
    %c0_i32 = arith.constant 0 : i32
    %c0_i32_0 = arith.constant 0 : i32
    %c0_i32_1 = arith.constant 0 : i32
    return %arg0, %c0_i32, %c0_i32_0 : i32, i32, i32
  }
}

</mosaic_0001>

<llo_original>
// kernel: tpu_custom_call.1
$region0: #{tpu_custom_call.1}
  #allocation0 [shape = 'u32[]', space=smem, size = 0x4, offset = 0x4, fixed_abs, tag = 'smem constant byte address 0x4 - core index']
  #allocation1 [shape = 'u32[144,128]{1,0:T(1,128)}', space=vmem, size = 0x12000, scoped, tag = 'internal scratch']
  %s0 = inlined_call_operand.hbm [shape: f32[4,8,8], index: 0, kind: input, shape index: {}]
  %s1 = inlined_call_operand.hbm [shape: f32[4,8,16], index: 1, kind: input, shape index: {}]
  %s2 = inlined_call_operand.hbm [shape: f32[16,256], index: 2, kind: input, shape index: {}]
  %s3 = inlined_call_operand.vmem [shape: f32[1,256], index: 3, kind: input, shape index: {}]
  %s4 = inlined_call_operand.hbm [shape: f32[4,8,128], index: 4, kind: output, shape index: {}]
  %s5 = sld [smem:[#allocation0]]
  $region61: #{tpu_custom_call.1} parent=0
    _
  %s7 = ssub.s32 1, %s5
  %s8 = scalar_select 0, %s7, %s5
  $region1: #{tpu_custom_call.1} parent=0
    #allocation2 [shape = 'u8[16384]{0}', space=vmem, size = 0x4000, scoped, tag = 'input window, operand 0']
    #allocation3 [shape = 's32[2]{0}', space=sflag, size = 0x8, scoped, tag = 'scoped memory for tpu_custom_call.1']
    #allocation4 [shape = 's32[2]{0}', space=sflag, size = 0x8, scoped, tag = 'scoped memory for tpu_custom_call.1']
    #allocation5 [shape = 'u8[16384]{0}', space=vmem, size = 0x4000, scoped, tag = 'input window, operand 1']
    #allocation6 [shape = 's32[2]{0}', space=sflag, size = 0x8, scoped, tag = 'scoped memory for tpu_custom_call.1']
    #allocation7 [shape = 'u8[16384]{0}', space=vmem, size = 0x4000, scoped, tag = 'input window, operand 2, single buffered']
    #allocation8 [shape = 'u8[16384]{0}', space=vmem, size = 0x4000, scoped, tag = 'output window, operand 0']
    %9 = vsyncpa [#allocation3], 0
    %s10 = scalar_lea.sflag [#allocation3], 1
    %11 = vsyncpa %s10, 0
    %12 = vsyncpa [#allocation6], 0
    %s13 = scalar_lea.sflag [#allocation6], 1
    %14 = vsyncpa %s13, 0
    %15 = vsyncpa [#allocation4], 0
    %s16 = scalar_lea.sflag [#allocation4], 1
    %17 = vsyncpa %s16, 0
    loop: start=0, step=1, limit=4
    $region2: #{tpu_custom_call.1} parent=1 // loop_pre_header
      _
    $region3: #{tpu_custom_call.1} parent=1 // loop_header
      %s19 = sphi 0, %s23
      %p20 = scmp.ge.s32.totalorder %s19, 4
      %s29 = sphi 0, %s31
      %s32 = sphi 0, %s29
      %s33 = sphi 0, %s32
      %s49 = sphi 0, %s33
      %s55 = sphi 0, %s57
      %s58 = sphi 0, %s55
      %s59 = sphi 0, %s58
      %s75 = sphi 0, %s59
      %s79 = sphi 0, %s79
      %s81 = sphi 0, %s79
      %s82 = sphi 0, %s81
      %s96 = sphi 0, %s82
      %s100 = sphi 0, %s100
      %s102 = sphi 0, %s100
      %s103 = sphi 0, %s102
      %s117 = sphi 0, %s103
      %s123 = sphi 0, %s125
      %s126 = sphi 0, %s123
      %s127 = sphi 0, %s126
      %s143 = sphi 0, %s127
    $region4: #{tpu_custom_call.1} parent=1 // loop_header_branch
      %22 = sbr.rel (%p20) target = $region8
    $region5: #{tpu_custom_call.1} parent=1 // loop_body
      %s24 = ssub.s32 %s19, 1
      %s25 = ssub.s32 %s19, 2
      %s26 = sadd.s32 %s19, 1
      %s27 = ssub.s32 %s19, %s26
      %p28 = scmp.eq.s32.totalorder %s27, 0
      %s30 = sadd.s32 %s29, 1
      %s31 = scalar_select %p28, %s29, %s30
      %p34 = pneg %p28
      %p35 = scmp.eq.s32.totalorder %s19, 1
      %p36 = por %p34, %p35
      %p37 = scmp.ne.s32.totalorder %s29, %s32
      %p38 = scmp.eq.s32.totalorder %s19, 0
      %p39 = por %p37, %p38
      %p40 = scmp.ne.s32.totalorder %s29, %s32
      %p41 = scmp.eq.s32.totalorder %s24, 1
      %p42 = por %p40, %p41
      %p43 = scmp.ne.s32.totalorder %s32, %s33
      %p44 = scmp.eq.s32.totalorder %s24, 0
      %p45 = por %p43, %p44
      %p46 = scmp.ne.s32.totalorder %s32, %s33
      %p47 = scmp.eq.s32.totalorder %s25, 1
      %p48 = por %p46, %p47
      %p50 = scmp.ne.s32.totalorder %s33, %s49
      %p51 = scmp.eq.s32.totalorder %s25, 0
      %p52 = por %p50, %p51
      %s53 = ssub.s32 %s19, %s26
      %p54 = scmp.eq.s32.totalorder %s53, 0
      %s56 = sadd.s32 %s55, 1
      %s57 = scalar_select %p54, %s55, %s56
      %p60 = pneg %p54
      %p61 = scmp.eq.s32.totalorder %s19, 1
      %p62 = por %p60, %p61
      %p63 = scmp.ne.s32.totalorder %s55, %s58
      %p64 = scmp.eq.s32.totalorder %s19, 0
      %p65 = por %p63, %p64
      %p66 = scmp.ne.s32.totalorder %s55, %s58
      %p67 = scmp.eq.s32.totalorder %s24, 1
      %p68 = por %p66, %p67
      %p69 = scmp.ne.s32.totalorder %s58, %s59
      %p70 = scmp.eq.s32.totalorder %s24, 0
      %p71 = por %p69, %p70
      %p72 = scmp.ne.s32.totalorder %s58, %s59
      %p73 = scmp.eq.s32.totalorder %s25, 1
      %p74 = por %p72, %p73
      %p76 = scmp.ne.s32.totalorder %s59, %s75
      %p77 = scmp.eq.s32.totalorder %s25, 0
      %p78 = por %p76, %p77
      %s80 = sadd.s32 %s79, 1
      %p83 = scmp.eq.s32.totalorder %s19, 1
      %p84 = scmp.ne.s32.totalorder %s79, %s81
      %p85 = scmp.eq.s32.totalorder %s19, 0
      %p86 = por %p84, %p85
      %p87 = scmp.ne.s32.totalorder %s79, %s81
      %p88 = scmp.eq.s32.totalorder %s24, 1
      %p89 = por %p87, %p88
      %p90 = scmp.ne.s32.totalorder %s81, %s82
      %p91 = scmp.eq.s32.totalorder %s24, 0
      %p92 = por %p90, %p91
      %p93 = scmp.ne.s32.totalorder %s81, %s82
      %p94 = scmp.eq.s32.totalorder %s25, 1
      %p95 = por %p93, %p94
      %p97 = scmp.ne.s32.totalorder %s82, %s96
      %p98 = scmp.eq.s32.totalorder %s25, 0
      %p99 = por %p97, %p98
      %s101 = sadd.s32 %s100, 1
      %p104 = scmp.eq.s32.totalorder %s19, 1
      %p105 = scmp.ne.s32.totalorder %s100, %s102
      %p106 = scmp.eq.s32.totalorder %s19, 0
      %p107 = por %p105, %p106
      %p108 = scmp.ne.s32.totalorder %s100, %s102
      %p109 = scmp.eq.s32.totalorder %s24, 1
      %p110 = por %p108, %p109
      %p111 = scmp.ne.s32.totalorder %s102, %s103
      %p112 = scmp.eq.s32.totalorder %s24, 0
      %p113 = por %p111, %p112
      %p114 = scmp.ne.s32.totalorder %s102, %s103
      %p115 = scmp.eq.s32.totalorder %s25, 1
      %p116 = por %p114, %p115
      %p118 = scmp.ne.s32.totalorder %s103, %s117
      %p119 = scmp.eq.s32.totalorder %s25, 0
      %p120 = por %p118, %p119
      %s121 = ssub.s32 %s19, %s26
      %p122 = scmp.eq.s32.totalorder %s121, 0
      %s124 = sadd.s32 %s123, 1
      %s125 = scalar_select %p122, %s123, %s124
      %p128 = pneg %p122
      %p129 = scmp.eq.s32.totalorder %s19, 1
      %p130 = por %p128, %p129
      %p131 = scmp.ne.s32.totalorder %s123, %s126
      %p132 = scmp.eq.s32.totalorder %s19, 0
      %p133 = por %p131, %p132
      %p134 = scmp.ne.s32.totalorder %s123, %s126
      %p135 = scmp.eq.s32.totalorder %s24, 1
      %p136 = por %p134, %p135
      %p137 = scmp.ne.s32.totalorder %s126, %s127
      %p138 = scmp.eq.s32.totalorder %s24, 0
      %p139 = por %p137, %p138
      %p140 = scmp.ne.s32.totalorder %s126, %s127
      %p141 = scmp.eq.s32.totalorder %s25, 1
      %p142 = por %p140, %p141
      %p144 = scmp.ne.s32.totalorder %s127, %s143
      %p145 = scmp.eq.s32.totalorder %s25, 0
      %p146 = por %p144, %p145
      %p147 = scmp.le.s32.totalorder 1, %s19
      %p148 = scmp.lt.s32.totalorder %s19, 3
      %p149 = pnand %p147, %p148
      %p150 = pneg %p149
      // Predicated region
      $region9: #{tpu_custom_call.1} parent=5 // pred_check
        _
      $region10: #{tpu_custom_call.1} parent=5 // pred_check_branch
        %152 = sbr.rel (%p149) target = $region12
      $region11: #{tpu_custom_call.1} parent=5 // pred_region
        %s153 = ssub.s32 %s19, 1
        // Predicated region
        $region13: #{tpu_custom_call.1} parent=11 // pred_check
          %p154 = pneg %p92
        $region14: #{tpu_custom_call.1} parent=11 // pred_check_branch
          %156 = sbr.rel (%p154) target = $region16
        $region15: #{tpu_custom_call.1} parent=11 // pred_region
          %s158 = ssub.s32 512, 512
          %159 = vsyncadd [#allocation6], %s158
          %s160 = sshll.u32 [#allocation7], 4
          %s161 = int_to_ptr.vmem [resolvable:$true] %s160
          %166 = dma.hbm_to_vmem [thread:$0]  %s2, 512, %s161, [#allocation6], 256, 256, 16
        $region16: #{tpu_custom_call.1} parent=11 // pred_fallthru
          _
        // Predicated region
        $region17: #{tpu_custom_call.1} parent=11 // pred_check
          %p167 = pneg %p113
        $region18: #{tpu_custom_call.1} parent=11 // pred_check_branch
          %169 = sbr.rel (%p167) target = $region20
        $region19: #{tpu_custom_call.1} parent=11 // pred_region
          _
        $region20: #{tpu_custom_call.1} parent=11 // pred_fallthru
          _
      $region12: #{tpu_custom_call.1} parent=5 // pred_fallthru
        _
      %p170 = scmp.lt.s32.totalorder %s19, 2
      // Predicated region
      $region21: #{tpu_custom_call.1} parent=5 // pred_check
        %p171 = pneg %p170
      $region22: #{tpu_custom_call.1} parent=5 // pred_check_branch
        %173 = sbr.rel (%p171) target = $region24
      $region23: #{tpu_custom_call.1} parent=5 // pred_region
        // Predicated region
        $region25: #{tpu_custom_call.1} parent=23 // pred_check
          %p174 = pneg %p39
        $region26: #{tpu_custom_call.1} parent=23 // pred_check_branch
          %176 = sbr.rel (%p174) target = $region28
        $region27: #{tpu_custom_call.1} parent=23 // pred_region
          %s177 = sand.u32 %s29, 1
          %s178 = scalar_lea.sflag [#allocation3], %s177
          %s179 = sand.u32 %s29, 1
          %s180 = smul.addr %s179, 16
          %s181 = scalar_lea.vmem [#allocation2], %s180
          %s182 = smul.u32 2, %s19
          %s184 = ssub.s32 256, 256
          %185 = vsyncadd %s178, %s184
          %s186 = smul.addr %s182, 128
          %s187 = scalar_lea.hbm %s0, %s186
          %s188 = sshll.u32 %s181, 4
          %s189 = int_to_ptr.vmem [resolvable:$true] %s188
          %194 = dma.hbm_to_vmem [thread:$0]  %s187, 256, %s189, %s178, 128, 128, 8
        $region28: #{tpu_custom_call.1} parent=23 // pred_fallthru
          _
        // Predicated region
        $region29: #{tpu_custom_call.1} parent=23 // pred_check
          %p195 = pneg %p65
        $region30: #{tpu_custom_call.1} parent=23 // pred_check_branch
          %197 = sbr.rel (%p195) target = $region32
        $region31: #{tpu_custom_call.1} parent=23 // pred_region
          %s198 = sand.u32 %s19, 1
          %s199 = scalar_lea.sflag [#allocation6], %s198
          %s200 = sand.u32 %s55, 1
          %s201 = smul.addr %s200, 16
          %s202 = scalar_lea.vmem [#allocation5], %s201
          %s203 = smul.u32 2, %s19
          %s205 = ssub.s32 256, 256
          %206 = vsyncadd %s199, %s205
          %s207 = smul.addr %s203, 128
          %s208 = scalar_lea.hbm %s1, %s207
          %s209 = sshll.u32 %s202, 4
          %s210 = int_to_ptr.vmem [resolvable:$true] %s209
          %215 = dma.hbm_to_vmem [thread:$0]  %s208, 256, %s210, %s199, 128, 128, 8
        $region32: #{tpu_custom_call.1} parent=23 // pred_fallthru
          _
      $region24: #{tpu_custom_call.1} parent=5 // pred_fallthru
        _
      %p216 = scmp.le.s32.totalorder 1, %s19
      %p217 = scmp.lt.s32.totalorder %s19, 3
      %p218 = pnand %p216, %p217
      %p219 = pneg %p218
      // Predicated region
      $region33: #{tpu_custom_call.1} parent=5 // pred_check
        _
      $region34: #{tpu_custom_call.1} parent=5 // pred_check_branch
        %221 = sbr.rel (%p218) target = $region36
      $region35: #{tpu_custom_call.1} parent=5 // pred_region
        %s222 = ssub.s32 %s19, 1
        %s223 = sand.u32 %s32, 1
        %s224 = scalar_lea.sflag [#allocation3], %s223
        %s225 = sand.u32 %s32, 1
        %s226 = smul.addr %s225, 16
        %s227 = scalar_lea.vmem [#allocation2], %s226
        // Predicated region
        $region37: #{tpu_custom_call.1} parent=35 // pred_check
          %p228 = pneg %p45
        $region38: #{tpu_custom_call.1} parent=35 // pred_check_branch
          %230 = sbr.rel (%p228) target = $region40
        $region39: #{tpu_custom_call.1} parent=35 // pred_region
          %231 = dma.done %s224, 256
        $region40: #{tpu_custom_call.1} parent=35 // pred_fallthru
          _
        %s232 = sand.u32 %s24, 1
        %s233 = scalar_lea.sflag [#allocation6], %s232
        %s234 = sand.u32 %s58, 1
        %s235 = smul.addr %s234, 16
        %s236 = scalar_lea.vmem [#allocation5], %s235
        // Predicated region
        $region41: #{tpu_custom_call.1} parent=35 // pred_check
          %p237 = pneg %p71
        $region42: #{tpu_custom_call.1} parent=35 // pred_check_branch
          %239 = sbr.rel (%p237) target = $region44
        $region43: #{tpu_custom_call.1} parent=35 // pred_region
          %240 = dma.done %s233, 256
        $region44: #{tpu_custom_call.1} parent=35 // pred_fallthru
          _
        // Predicated region
        $region45: #{tpu_custom_call.1} parent=35 // pred_check
          %p241 = pneg %p92
        $region46: #{tpu_custom_call.1} parent=35 // pred_check_branch
          %243 = sbr.rel (%p241) target = $region48
        $region47: #{tpu_custom_call.1} parent=35 // pred_region
          %244 = dma.done [#allocation6], 512
        $region48: #{tpu_custom_call.1} parent=35 // pred_fallthru
          _
        %s245 = sand.u32 %s32, 1
        %s246 = scalar_lea.sflag [#allocation3], %s245
        %s247 = sand.u32 %s32, 1
        %s248 = smul.addr %s247, 16
        %s249 = scalar_lea.vmem [#allocation2], %s248
        %p250 = pneg %p45
        %p251 = pneg %p42
        %s252 = sand.u32 %s24, 1
        %s253 = scalar_lea.sflag [#allocation6], %s252
        %s254 = sand.u32 %s58, 1
        %s255 = smul.addr %s254, 16
        %s256 = scalar_lea.vmem [#allocation5], %s255
        %p257 = pneg %p71
        %p258 = pneg %p68
        %p259 = pneg %p92
        %p260 = pneg %p89
        %p261 = pneg %p113
        %p262 = pneg %p110
        %p263 = pneg %p139
        %p264 = pneg %p136
        %s265 = sand.u32 %s126, 1
        %s266 = scalar_lea.sflag [#allocation4], %s265
        %s267 = sand.u32 %s126, 1
        %s268 = smul.addr %s267, 16
        %s269 = scalar_lea.vmem [#allocation8], %s268
        %s270 = smul.u32 2, %s24
        %s271 = smul.u32 2, %s24
        %s272 = smul.u32 2, %s24
        %v273 = vld [vmem:[%s227] sm:$0xff]
        %v274 = vld [vmem:[%s227 + $0x8] sm:$0xff]
        %v275 = vld [vmem:[%s236] sm:$0xff]
        %v276 = vld [vmem:[%s236 + $0x8] sm:$0xff]
        %v277 = vld [vmem:[#allocation7] sm:$0xff]
        %v278 = vld [vmem:[#allocation7 + $0x8] sm:$0xff]
        %v279 = vld [vmem:[#allocation7 + $0x10] sm:$0xff]
        %v280 = vld [vmem:[#allocation7 + $0x18] sm:$0xff]
        %v281 = vld [vmem:[%s3] sm:$0x3]
        %v283 = vlaneseq
        %v284 = vshrl.u32 %v283, 7
        %v285 = vsub.s32 0, %v284
        %v286 = vrot.slane %v281, %v285
        %v287 = vlaneseq
        %v288 = vshrl.u32 %v287, 7
        %v289 = vsub.s32 1, %v288
        %v290 = vrot.slane %v281, %v289
        %vm293 = vcmask 130048
        %v295 = vsel %vm293, %v275, 0
        %v298 = vsel %vm293, %v276, 0
        %300 = vmatprep.subr.mxu0 %v278
        %301 = vmatpush1.msra.mxu0 %v277
        %302 = vmatprep.subr.mxu0 %v280
        %303 = vmatpush1.msra.mxu0 %v279
        %304 = vmatprep.subr.mxu0 0.0
        %305 = vmatpush1.msra.mxu0 0.0
        %306 = vmatprep.subr.mxu0 0.0
        %307 = vmatpush1.msra.mxu0 0.0
        %308 = vmatprep.subr.mxu0 0.0
        %309 = vmatpush1.msra.mxu0 0.0
        %310 = vmatprep.subr.mxu0 0.0
        %311 = vmatpush1.msra.mxu0 0.0
        %312 = vmatprep.subr.mxu0 0.0
        %313 = vmatpush1.msra.mxu0 0.0
        %314 = vmatprep.subr.mxu0 0.0
        %315 = vmatpush1.msra.mxu0 0.0
        %316 = vmatprep.subr.mxu0 0.0
        %317 = vmatpush1.msra.mxu0 0.0
        %318 = vmatprep.subr.mxu0 0.0
        %319 = vmatpush1.msra.mxu0 0.0
        %320 = vmatprep.subr.mxu0 0.0
        %321 = vmatpush1.msra.mxu0 0.0
        %322 = vmatprep.subr.mxu0 0.0
        %323 = vmatpush1.msra.mxu0 0.0
        %324 = vmatprep.subr.mxu0 0.0
        %325 = vmatpush1.msra.mxu0 0.0
        %326 = vmatprep.subr.mxu0 0.0
        %327 = vmatpush1.msra.mxu0 0.0
        %328 = vmatprep.subr.mxu0 0.0
        %329 = vmatpush1.msra.mxu0 0.0
        %330 = vmatprep.subr.mxu0 0.0
        %331 = vmatpush1.msra.mxu0 0.0
        %332 = vmatprep.subr.mxu0 0.0
        %333 = vmatpush1.msra.mxu0 0.0
        %334 = vmatprep.subr.mxu0 0.0
        %335 = vmatpush1.msra.mxu0 0.0
        %336 = vmatprep.subr.mxu0 0.0
        %337 = vmatpush1.msra.mxu0 0.0
        %338 = vmatprep.subr.mxu0 0.0
        %339 = vmatpush1.msra.mxu0 0.0
        %340 = vmatprep.subr.mxu0 0.0
        %341 = vmatpush1.msra.mxu0 0.0
        %342 = vmatprep.subr.mxu0 0.0
        %343 = vmatpush1.msra.mxu0 0.0
        %344 = vmatprep.subr.mxu0 0.0
        %345 = vmatpush1.msra.mxu0 0.0
        %346 = vmatprep.subr.mxu0 0.0
        %347 = vmatpush1.msra.mxu0 0.0
        %348 = vmatprep.subr.mxu0 0.0
        %349 = vmatpush1.msra.mxu0 0.0
        %350 = vmatprep.subr.mxu0 0.0
        %351 = vmatpush1.msra.mxu0 0.0
        %352 = vmatprep.subr.mxu0 0.0
        %353 = vmatpush1.msra.mxu0 0.0
        %354 = vmatprep.subr.mxu0 0.0
        %355 = vmatpush1.msra.mxu0 0.0
        %356 = vmatprep.subr.mxu0 0.0
        %357 = vmatpush1.msra.mxu0 0.0
        %358 = vmatprep.subr.mxu0 0.0
        %359 = vmatpush1.msra.mxu0 0.0
        %360 = vmatprep.subr.mxu0 0.0
        %361 = vmatpush1.msra.mxu0 0.0
        %362 = vmatprep.subr.mxu0 0.0
        %363 = vmatpush1.msra.mxu0 0.0
        %364 = vmatprep.mubr.f32.mxu0 0.0
        %365 = vmatmul.mubr.f32.gmra.mrb[0].mxu0 %v295
        %v366 = vpop.f32.mrb[0].mxu0
        %v367 = vadd.f32 %v286, %v366
        %v368 = vpop.f32.mrb[0].mxu0
        %v369 = vadd.f32 %v290, %v368
        %370 = vmatprep.mubr.f32.mxu0 0.0
        %371 = vmatmul.mubr.f32.gmra.mrb[0].mxu0 %v298
        %v372 = vpop.f32.mrb[0].mxu0
        %v373 = vadd.f32 %v286, %v372
        %v374 = vpop.f32.mrb[0].mxu0
        %v375 = vadd.f32 %v290, %v374
        %376 = vdwg.mxu0
        %v377 = vmax.f32 %v367, 0.0
        %v378 = vmax.f32 %v369, 0.0
        %v379 = vmax.f32 %v373, 0.0
        %v380 = vmax.f32 %v375, 0.0
        %v381 = vand.u32 2147483647, %v273
        %v382 = vand.u32 2147483647, %v274
        %vm383 = vcmask 64512
        %v384 = vsel %vm383, %v381, 0.0
        %v385 = vrot.slane %v384, 4
        %v386 = vadd.f32 %v384, %v385
        %v387 = vrot.slane %v386, 2
        %v388 = vadd.f32 %v386, %v387
        %v389 = vrot.slane %v388, 1
        %v390 = vadd.f32 %v388, %v389
        %v391 = vsel %vm383, %v382, 0.0
        %v392 = vrot.slane %v391, 4
        %v393 = vadd.f32 %v391, %v392
        %v394 = vrot.slane %v393, 2
        %v395 = vadd.f32 %v393, %v394
        %v396 = vrot.slane %v395, 1
        %v397 = vadd.f32 %v395, %v396
        %v398 = vmax.f32 %v390, 1e-12
        %v399 = vmax.f32 %v397, 1e-12
        %v400 = vrcp.pop %v398
        %v401 = vmul.f32 1.0, %v400
        %v402 = vrcp.pop %v399
        %v403 = vmul.f32 1.0, %v402
        %405 = vbcast.lane.b32.xlu0 %v401, 256
        %v406 = vpop.permute.xlu0 %405
        %408 = vbcast.lane.b32.xlu0 %v403, 256
        %v409 = vpop.permute.xlu0 %408
        %v410 = vmul.f32 %v377, %v406
        %v411 = vmul.f32 %v379, %v409
        %v413 = vsel %vm383, %v273, 0
        %415 = vmatprep.subr.mxu0 0.0
        %416 = vmatpush1.msra.mxu0 %v410
        %417 = vmatprep.subr.mxu0 0.0
        %418 = vmatpush1.msra.mxu0 0.0
        %419 = vmatprep.subr.mxu0 0.0
        %420 = vmatpush1.msra.mxu0 0.0
        %421 = vmatprep.subr.mxu0 0.0
        %422 = vmatpush1.msra.mxu0 0.0
        %423 = vmatprep.subr.mxu0 0.0
        %424 = vmatpush1.msra.mxu0 0.0
        %425 = vmatprep.subr.mxu0 0.0
        %426 = vmatpush1.msra.mxu0 0.0
        %427 = vmatprep.subr.mxu0 0.0
        %428 = vmatpush1.msra.mxu0 0.0
        %429 = vmatprep.subr.mxu0 0.0
        %430 = vmatpush1.msra.mxu0 0.0
        %431 = vmatprep.subr.mxu0 0.0
        %432 = vmatpush1.msra.mxu0 0.0
        %433 = vmatprep.subr.mxu0 0.0
        %434 = vmatpush1.msra.mxu0 0.0
        %435 = vmatprep.subr.mxu0 0.0
        %436 = vmatpush1.msra.mxu0 0.0
        %437 = vmatprep.subr.mxu0 0.0
        %438 = vmatpush1.msra.mxu0 0.0
        %439 = vmatprep.subr.mxu0 0.0
        %440 = vmatpush1.msra.mxu0 0.0
        %441 = vmatprep.subr.mxu0 0.0
        %442 = vmatpush1.msra.mxu0 0.0
        %443 = vmatprep.subr.mxu0 0.0
        %444 = vmatpush1.msra.mxu0 0.0
        %445 = vmatprep.subr.mxu0 0.0
        %446 = vmatpush1.msra.mxu0 0.0
        %447 = vmatprep.subr.mxu0 0.0
        %448 = vmatpush1.msra.mxu0 0.0
        %449 = vmatprep.subr.mxu0 0.0
        %450 = vmatpush1.msra.mxu0 0.0
        %451 = vmatprep.subr.mxu0 0.0
        %452 = vmatpush1.msra.mxu0 0.0
        %453 = vmatprep.subr.mxu0 0.0
        %454 = vmatpush1.msra.mxu0 0.0
        %455 = vmatprep.subr.mxu0 0.0
        %456 = vmatpush1.msra.mxu0 0.0
        %457 = vmatprep.subr.mxu0 0.0
        %458 = vmatpush1.msra.mxu0 0.0
        %459 = vmatprep.subr.mxu0 0.0
        %460 = vmatpush1.msra.mxu0 0.0
        %461 = vmatprep.subr.mxu0 0.0
        %462 = vmatpush1.msra.mxu0 0.0
        %463 = vmatprep.subr.mxu0 0.0
        %464 = vmatpush1.msra.mxu0 0.0
        %465 = vmatprep.subr.mxu0 0.0
        %466 = vmatpush1.msra.mxu0 0.0
        %467 = vmatprep.subr.mxu0 0.0
        %468 = vmatpush1.msra.mxu0 0.0
        %469 = vmatprep.subr.mxu0 0.0
        %470 = vmatpush1.msra.mxu0 0.0
        %471 = vmatprep.subr.mxu0 0.0
        %472 = vmatpush1.msra.mxu0 0.0
        %473 = vmatprep.subr.mxu0 0.0
        %474 = vmatpush1.msra.mxu0 0.0
        %475 = vmatprep.subr.mxu0 0.0
        %476 = vmatpush1.msra.mxu0 0.0
        %477 = vmatprep.subr.mxu0 0.0
        %478 = vmatpush1.msra.mxu0 0.0
        %479 = vmatprep.mubr.f32.mxu0 0.0
        %480 = vmatmul.mubr.f32.gmra.mrb[0].mxu0 %v413
        %v481 = vpop.f32.mrb[0].mxu0
        %v482 = vadd.f32 %v378, %v481
        %v483 = vpop.f32.mrb[0].mxu0
        %484 = vdwg.mxu0
        %v486 = vsel %vm383, %v274, 0
        %488 = vmatprep.subr.mxu0 0.0
        %489 = vmatpush1.msra.mxu0 %v411
        %490 = vmatprep.subr.mxu0 0.0
        %491 = vmatpush1.msra.mxu0 0.0
        %492 = vmatprep.subr.mxu0 0.0
        %493 = vmatpush1.msra.mxu0 0.0
        %494 = vmatprep.subr.mxu0 0.0
        %495 = vmatpush1.msra.mxu0 0.0
        %496 = vmatprep.subr.mxu0 0.0
        %497 = vmatpush1.msra.mxu0 0.0
        %498 = vmatprep.subr.mxu0 0.0
        %499 = vmatpush1.msra.mxu0 0.0
        %500 = vmatprep.subr.mxu0 0.0
        %501 = vmatpush1.msra.mxu0 0.0
        %502 = vmatprep.subr.mxu0 0.0
        %503 = vmatpush1.msra.mxu0 0.0
        %504 = vmatprep.subr.mxu0 0.0
        %505 = vmatpush1.msra.mxu0 0.0
        %506 = vmatprep.subr.mxu0 0.0
        %507 = vmatpush1.msra.mxu0 0.0
        %508 = vmatprep.subr.mxu0 0.0
        %509 = vmatpush1.msra.mxu0 0.0
        %510 = vmatprep.subr.mxu0 0.0
        %511 = vmatpush1.msra.mxu0 0.0
        %512 = vmatprep.subr.mxu0 0.0
        %513 = vmatpush1.msra.mxu0 0.0
        %514 = vmatprep.subr.mxu0 0.0
        %515 = vmatpush1.msra.mxu0 0.0
        %516 = vmatprep.subr.mxu0 0.0
        %517 = vmatpush1.msra.mxu0 0.0
        %518 = vmatprep.subr.mxu0 0.0
        %519 = vmatpush1.msra.mxu0 0.0
        %520 = vmatprep.subr.mxu0 0.0
        %521 = vmatpush1.msra.mxu0 0.0
        %522 = vmatprep.subr.mxu0 0.0
        %523 = vmatpush1.msra.mxu0 0.0
        %524 = vmatprep.subr.mxu0 0.0
        %525 = vmatpush1.msra.mxu0 0.0
        %526 = vmatprep.subr.mxu0 0.0
        %527 = vmatpush1.msra.mxu0 0.0
        %528 = vmatprep.subr.mxu0 0.0
        %529 = vmatpush1.msra.mxu0 0.0
        %530 = vmatprep.subr.mxu0 0.0
        %531 = vmatpush1.msra.mxu0 0.0
        %532 = vmatprep.subr.mxu0 0.0
        %533 = vmatpush1.msra.mxu0 0.0
        %534 = vmatprep.subr.mxu0 0.0
        %535 = vmatpush1.msra.mxu0 0.0
        %536 = vmatprep.subr.mxu0 0.0
        %537 = vmatpush1.msra.mxu0 0.0
        %538 = vmatprep.subr.mxu0 0.0
        %539 = vmatpush1.msra.mxu0 0.0
        %540 = vmatprep.subr.mxu0 0.0
        %541 = vmatpush1.msra.mxu0 0.0
        %542 = vmatprep.subr.mxu0 0.0
        %543 = vmatpush1.msra.mxu0 0.0
        %544 = vmatprep.subr.mxu0 0.0
        %545 = vmatpush1.msra.mxu0 0.0
        %546 = vmatprep.subr.mxu0 0.0
        %547 = vmatpush1.msra.mxu0 0.0
        %548 = vmatprep.subr.mxu0 0.0
        %549 = vmatpush1.msra.mxu0 0.0
        %550 = vmatprep.subr.mxu0 0.0
        %551 = vmatpush1.msra.mxu0 0.0
        %552 = vmatprep.mubr.f32.mxu0 0.0
        %553 = vmatmul.mubr.f32.gmra.mrb[0].mxu0 %v486
        %v554 = vpop.f32.mrb[0].mxu0
        %v555 = vadd.f32 %v380, %v554
        %v556 = vpop.f32.mrb[0].mxu0
        %557 = vdwg.mxu0
        %558 = vst [vmem:[%s269] sm:$0xff] %v482
        %559 = vst [vmem:[%s269 + $0x8] sm:$0xff] %v555
        %s560 = sand.u32 %s126, 1
        %s561 = scalar_lea.sflag [#allocation4], %s560
        %s562 = sand.u32 %s126, 1
        %s563 = smul.addr %s562, 16
        %s564 = scalar_lea.vmem [#allocation8], %s563
        // Predicated region
        $region49: #{tpu_custom_call.1} parent=35 // pred_check
          %p565 = pneg %p136
        $region50: #{tpu_custom_call.1} parent=35 // pred_check_branch
          %567 = sbr.rel (%p565) target = $region52
        $region51: #{tpu_custom_call.1} parent=35 // pred_region
          %s568 = smul.u32 2, %s24
          %s570 = ssub.s32 256, 256
          %571 = vsyncadd %s561, %s570
          %s572 = smul.addr %s568, 128
          %s573 = scalar_lea.hbm %s4, %s572
          %s574 = sshll.u32 %s564, 4
          %s575 = int_to_ptr.vmem [resolvable:$true] %s574
          %580 = dma.vmem_to_hbm [thread:$0]  %s575, 256, %s573, %s561, 128, 128, 8
        $region52: #{tpu_custom_call.1} parent=35 // pred_fallthru
          _
      $region36: #{tpu_custom_call.1} parent=5 // pred_fallthru
        _
      %p581 = scmp.le.s32.totalorder 2, %s19
      // Predicated region
      $region53: #{tpu_custom_call.1} parent=5 // pred_check
        %p582 = pneg %p581
      $region54: #{tpu_custom_call.1} parent=5 // pred_check_branch
        %584 = sbr.rel (%p582) target = $region56
      $region55: #{tpu_custom_call.1} parent=5 // pred_region
        %s585 = ssub.s32 %s19, 2
        // Predicated region
        $region57: #{tpu_custom_call.1} parent=55 // pred_check
          %p586 = pneg %p142
        $region58: #{tpu_custom_call.1} parent=55 // pred_check_branch
          %588 = sbr.rel (%p586) target = $region60
        $region59: #{tpu_custom_call.1} parent=55 // pred_region
          %s589 = sand.u32 %s127, 1
          %s590 = scalar_lea.sflag [#allocation4], %s589
          %s591 = sand.u32 %s127, 1
          %s592 = smul.addr %s591, 16
          %s593 = scalar_lea.vmem [#allocation8], %s592
          %594 = dma.done %s590, 256
        $region60: #{tpu_custom_call.1} parent=55 // pred_fallthru
          _
      $region56: #{tpu_custom_call.1} parent=5 // pred_fallthru
        _
    $region6: #{tpu_custom_call.1} parent=1 // loop_footer
      %s23 = sadd.s32 1, %s19
    $region7: #{tpu_custom_call.1} parent=1 // loop_footer_branch
      %18 = sbr.rel target = $region3
    $region8: #{tpu_custom_call.1} parent=1 // loop_exit
      _
    %595 = vsyncpa [#allocation3], 1
    %s596 = scalar_lea.sflag [#allocation3], 1
    %597 = vsyncpa %s596, 1
    %598 = vsyncpa [#allocation6], 1
    %s599 = scalar_lea.sflag [#allocation6], 1
    %600 = vsyncpa %s599, 1
    %601 = vsyncpa [#allocation4], 1
    %s602 = scalar_lea.sflag [#allocation4], 1
    %603 = vsyncpa %s602, 1

</llo_original>
